<compile_context>
chip_gen: v7x
topology: tpu7x:2x2x1
jax: 0.10.0
libtpu: 0.0.40
codegen_flags: <defaults>
</compile_context>

<pallas_src>
import functools
import math

import jax
import jax.numpy as jnp
from jax.experimental import pallas as pl
from jax.experimental.pallas import tpu as pltpu

IN_DIM = 400
HID_DIM = 128
OUT_DIM = 4
OUT_PAD = 128   # fc2 weights/bias lane-padded width (compute side only)


def _policy_mlp_kernel(x_ref, w1_ref, b1_ref, w2_ref, b2_ref, o_ref):
    # fc1: [tm,400] @ [400,128] + [1,128] -> relu  (Mosaic handles K=400).
    h = jnp.dot(x_ref[...], w1_ref[...], preferred_element_type=jnp.float32)
    h = jnp.maximum(h + b1_ref[...], 0.0)
    # fc2 on a lane-padded [128,128] weight so the second MXU pass / bias add
    # are fully lane-aligned; padded columns are exactly zero.
    o = jnp.dot(h, w2_ref[...], preferred_element_type=jnp.float32)
    o = jnp.maximum(o + b2_ref[...], 0.0)
    # Store only as many columns as the output ref has (4 narrow / 128 dense).
    o_ref[...] = o[:, : o_ref.shape[-1]].astype(o_ref.dtype)


def _round_up(n, m):
    return ((n + m - 1) // m) * m


def _x_block_spec(tm, num_steps):
    index_map = lambda i: (i, 0)
    # Triple-buffer the (long-pole) x DMA when supported and worthwhile.
    buffered = getattr(pl, "Buffered", None)
    if buffered is not None and num_steps >= 3:
        try:
            return pl.BlockSpec((tm, IN_DIM), index_map,
                                pipeline_mode=buffered(3))
        except TypeError:
            pass
    return pl.BlockSpec((tm, IN_DIM), index_map)


@functools.partial(jax.jit, static_argnames=("tm", "lane_dense_out"))
def policy_forward(x, w1, b1, w2, b2, *, tm=512, lane_dense_out=False):
    """x: [B,400] f32; w1: [400,128]; b1: [1,128]; w2: [128,4]; b2: [1,4].

    Returns [B,4] f32 = relu(relu(x @ w1 + b1) @ w2 + b2).
    """
    B = x.shape[0]

    x = x.astype(jnp.float32)
    w1 = w1.astype(jnp.float32)                       # [400,128], no K padding
    b1 = b1.astype(jnp.float32).reshape(1, HID_DIM)
    # fc2 weights/bias are tiny and resident: zero-pad to 128 lanes once.
    w2_p = jnp.pad(w2.astype(jnp.float32), ((0, 0), (0, OUT_PAD - OUT_DIM)))
    b2_p = jnp.pad(b2.astype(jnp.float32).reshape(1, OUT_DIM),
                   ((0, 0), (0, OUT_PAD - OUT_DIM)))

    # Batch tile: multiple of 8, no larger than (rounded-up) B, and small
    # enough that the grid has >= 2 steps whenever B > 8 (v7x megacore).
    tm = max(8, min(_round_up(tm, 8), _round_up(B, 8)))
    if B > 8:
        tm = min(tm, max(8, _round_up(pl.cdiv(B, 2), 8)))
    num_steps = pl.cdiv(B, tm)           # ragged last tile; OOB rows discarded
    grid = (num_steps,)

    out_cols = OUT_PAD if lane_dense_out else OUT_DIM

    out = pl.pallas_call(
        _policy_mlp_kernel,
        out_shape=jax.ShapeDtypeStruct((B, out_cols), jnp.float32),
        grid=grid,
        in_specs=[
            _x_block_spec(tm, num_steps),                        # x (pipelined)
            pl.BlockSpec((IN_DIM, HID_DIM), lambda i: (0, 0)),   # w1 (resident)
            pl.BlockSpec((1, HID_DIM), lambda i: (0, 0)),        # b1 (resident)
            pl.BlockSpec((HID_DIM, OUT_PAD), lambda i: (0, 0)),  # w2 (resident)
            pl.BlockSpec((1, OUT_PAD), lambda i: (0, 0)),        # b2 (resident)
        ],
        out_specs=pl.BlockSpec((tm, out_cols), lambda i: (i, 0)),
        compiler_params=pltpu.CompilerParams(
            dimension_semantics=("parallel",),
        ),
    )(x, w1, b1, w2_p, b2_p)

    return out[:, :OUT_DIM] if lane_dense_out else out


def init_params(key):
    """Deterministic params mirroring the PyTorch __init__:
    weights zeroed (torch.nn.init.zeros_), biases ~ U(-1/sqrt(fan_in), +)."""
    k1, k2 = jax.random.split(key)
    w1 = jnp.zeros((IN_DIM, HID_DIM), jnp.float32)
    w2 = jnp.zeros((HID_DIM, OUT_DIM), jnp.float32)
    bound1 = 1.0 / math.sqrt(IN_DIM)
    bound2 = 1.0 / math.sqrt(HID_DIM)
    b1 = jax.random.uniform(k1, (1, HID_DIM), jnp.float32, -bound1, bound1)
    b2 = jax.random.uniform(k2, (1, OUT_DIM), jnp.float32, -bound2, bound2)
    return w1, b1, w2, b2


def reference_forward(x, w1, b1, w2, b2):
    h = jnp.maximum(x @ w1 + b1, 0.0)
    return jnp.maximum(h @ w2 + b2, 0.0)


if __name__ == "__main__":
    key = jax.random.PRNGKey(0)
    k_params, k_x, k_w1, k_w2 = jax.random.split(key, 4)

    batch = 8
    x = jax.random.normal(k_x, (batch, IN_DIM), jnp.float32)

    # 1) Faithful-to-module params (zero weights, uniform biases).
    w1, b1, w2, b2 = init_params(k_params)
    out = jax.block_until_ready(policy_forward(x, w1, b1, w2, b2))
    ref = reference_forward(x, w1, b1, w2, b2)
    assert out.shape == (batch, OUT_DIM)
    assert jnp.allclose(out, ref, atol=1e-5, rtol=1e-5)

    # 2) Nonzero random weights so both MXU matmuls are actually exercised.
    w1r = 0.05 * jax.random.normal(k_w1, (IN_DIM, HID_DIM), jnp.float32)
    w2r = 0.05 * jax.random.normal(k_w2, (HID_DIM, OUT_DIM), jnp.float32)
    out2 = jax.block_until_ready(policy_forward(x, w1r, b1, w2r, b2))
    ref2 = reference_forward(x, w1r, b1, w2r, b2)
    assert jnp.allclose(out2, ref2, atol=1e-4, rtol=1e-4)

    # 3) Batch not a multiple of the tile size (ragged last tile, >=2 grid
    #    steps) plus the lane-dense output variant.
    xb = jax.random.normal(k_x, (37, IN_DIM), jnp.float32)
    out3 = jax.block_until_ready(
        policy_forward(xb, w1r, b1, w2r, b2, lane_dense_out=True))
    ref3 = reference_forward(xb, w1r, b1, w2r, b2)
    assert out3.shape == (37, OUT_DIM)
    assert jnp.allclose(out3, ref3, atol=1e-4, rtol=1e-4)

    # 4) Larger ragged batch: multiple full tiles at the default tm=512,
    #    exercises the triple-buffered x stream and the ragged final tile.
    xc = jax.random.normal(k_x, (1600, IN_DIM), jnp.float32)
    out4 = jax.block_until_ready(policy_forward(xc, w1r, b1, w2r, b2))
    ref4 = reference_forward(xc, w1r, b1, w2r, b2)
    assert out4.shape == (1600, OUT_DIM)
    assert jnp.allclose(out4, ref4, atol=1e-4, rtol=1e-4)

    print("KERNEL_OK")
</pallas_src>

<mosaic_0001>
module attributes {stable_mosaic.version = 11 : i64} {
  func.func @_policy_mlp_kernel(%arg0: i32, %arg1: memref<8x400xf32, #tpu.memory_space<vmem>>, %arg2: memref<400x128xf32, #tpu.memory_space<vmem>>, %arg3: memref<1x128xf32, #tpu.memory_space<vmem>>, %arg4: memref<128x128xf32, #tpu.memory_space<vmem>>, %arg5: memref<1x128xf32, #tpu.memory_space<vmem>>, %arg6: memref<8x4xf32, #tpu.memory_space<vmem>>) attributes {dimension_semantics = [#tpu.dimension_semantics<parallel>], iteration_bounds = array<i64: 1>, scalar_prefetch = 0 : i64, scratch_operands = 0 : i64, tpu.core_type = #tpu.core_type<tc>, window_params = [{transform_indices = @transform_0, window_bounds = array<i64: 8, 400>}, {pipeline_mode = #tpu.pipeline_mode<synchronous>, transform_indices = @transform_1, window_bounds = array<i64: 400, 128>}, {pipeline_mode = #tpu.pipeline_mode<synchronous>, transform_indices = @transform_2, window_bounds = array<i64: 1, 128>}, {pipeline_mode = #tpu.pipeline_mode<synchronous>, transform_indices = @transform_3, window_bounds = array<i64: 128, 128>}, {pipeline_mode = #tpu.pipeline_mode<synchronous>, transform_indices = @transform_4, window_bounds = array<i64: 1, 128>}, {transform_indices = @transform_5, window_bounds = array<i64: 8, 4>}]} {
    %c0 = arith.constant 0 : index
    %c0_0 = arith.constant 0 : index
    %0 = vector.load %arg1[%c0, %c0_0] : memref<8x400xf32, #tpu.memory_space<vmem>>, vector<8x400xf32>
    %c0_1 = arith.constant 0 : index
    %c0_2 = arith.constant 0 : index
    %1 = vector.load %arg2[%c0_1, %c0_2] : memref<400x128xf32, #tpu.memory_space<vmem>>, vector<400x128xf32>
    %cst = arith.constant dense<0.000000e+00> : vector<8x128xf32>
    %2 = tpu.matmul %0, %1, %cst {dimension_numbers = #tpu.dot_dimension_numbers<[1], [0], [0], [1], [0, 0, 1, 1], [], []>} : vector<8x400xf32>, vector<400x128xf32>, vector<8x128xf32> -> vector<8x128xf32>
    %c0_3 = arith.constant 0 : index
    %c0_4 = arith.constant 0 : index
    %3 = vector.load %arg3[%c0_3, %c0_4] : memref<1x128xf32, #tpu.memory_space<vmem>>, vector<1x128xf32>
    %4 = vector.broadcast %3 : vector<1x128xf32> to vector<8x128xf32>
    %5 = arith.addf %2, %4 : vector<8x128xf32>
    %cst_5 = arith.constant 0.000000e+00 : f32
    %6 = vector.broadcast %cst_5 : f32 to vector<8x128xf32>
    %7 = arith.maximumf %5, %6 : vector<8x128xf32>
    %c0_6 = arith.constant 0 : index
    %c0_7 = arith.constant 0 : index
    %8 = vector.load %arg4[%c0_6, %c0_7] : memref<128x128xf32, #tpu.memory_space<vmem>>, vector<128x128xf32>
    %cst_8 = arith.constant dense<0.000000e+00> : vector<8x128xf32>
    %9 = tpu.matmul %7, %8, %cst_8 {dimension_numbers = #tpu.dot_dimension_numbers<[1], [0], [0], [1], [0, 0, 1, 1], [], []>} : vector<8x128xf32>, vector<128x128xf32>, vector<8x128xf32> -> vector<8x128xf32>
    %c0_9 = arith.constant 0 : index
    %c0_10 = arith.constant 0 : index
    %10 = vector.load %arg5[%c0_9, %c0_10] : memref<1x128xf32, #tpu.memory_space<vmem>>, vector<1x128xf32>
    %11 = vector.broadcast %10 : vector<1x128xf32> to vector<8x128xf32>
    %12 = arith.addf %9, %11 : vector<8x128xf32>
    %cst_11 = arith.constant 0.000000e+00 : f32
    %13 = vector.broadcast %cst_11 : f32 to vector<8x128xf32>
    %14 = arith.maximumf %12, %13 : vector<8x128xf32>
    %15 = vector.extract_strided_slice %14 {offsets = [0, 0], sizes = [8, 4], strides = [1, 1]} : vector<8x128xf32> to vector<8x4xf32>
    %c0_12 = arith.constant 0 : index
    %c0_13 = arith.constant 0 : index
    %16 = vector.load %arg6[%c0_12, %c0_13] : memref<8x4xf32, #tpu.memory_space<vmem>>, vector<8x4xf32>
    tpu.vector_store %arg6[%c0_12, %c0_13], %15 {strides = array<i32>} : memref<8x4xf32, #tpu.memory_space<vmem>>, vector<8x4xf32>,
    return
  }
  func.func @transform_0(%arg0: i32) -> (i32, i32) {
    %c0_i32 = arith.constant 0 : i32
    %c0_i32_0 = arith.constant 0 : i32
    return %arg0, %c0_i32 : i32, i32
  }
  func.func @transform_1(%arg0: i32) -> (i32, i32) {
    %c0_i32 = arith.constant 0 : i32
    %c0_i32_0 = arith.constant 0 : i32
    %c0_i32_1 = arith.constant 0 : i32
    return %c0_i32, %c0_i32_0 : i32, i32
  }
  func.func @transform_2(%arg0: i32) -> (i32, i32) {
    %c0_i32 = arith.constant 0 : i32
    %c0_i32_0 = arith.constant 0 : i32
    %c0_i32_1 = arith.constant 0 : i32
    return %c0_i32, %c0_i32_0 : i32, i32
  }
  func.func @transform_3(%arg0: i32) -> (i32, i32) {
    %c0_i32 = arith.constant 0 : i32
    %c0_i32_0 = arith.constant 0 : i32
    %c0_i32_1 = arith.constant 0 : i32
    return %c0_i32, %c0_i32_0 : i32, i32
  }
  func.func @transform_4(%arg0: i32) -> (i32, i32) {
    %c0_i32 = arith.constant 0 : i32
    %c0_i32_0 = arith.constant 0 : i32
    %c0_i32_1 = arith.constant 0 : i32
    return %c0_i32, %c0_i32_0 : i32, i32
  }
  func.func @transform_5(%arg0: i32) -> (i32, i32) {
    %c0_i32 = arith.constant 0 : i32
    %c0_i32_0 = arith.constant 0 : i32
    return %arg0, %c0_i32 : i32, i32
  }
}

</mosaic_0001>

<llo_original>
// kernel: policy_forward.1
$region0: #{policy_forward.1}
  #allocation0 [shape = 'u32[]', space=smem, size = 0x4, offset = 0x4, fixed_abs, tag = 'smem constant byte address 0x4 - core index']
  #allocation1 [shape = 'u32[144,128]{1,0:T(1,128)}', space=vmem, size = 0x12000, scoped, tag = 'internal scratch']
  %s0 = inlined_call_operand.vmem [shape: f32[8,400], index: 0, kind: input, shape index: {}]
  %s1 = inlined_call_operand.hbm [shape: f32[400,128], index: 1, kind: input, shape index: {}]
  %s2 = inlined_call_operand.vmem [shape: f32[1,128], index: 2, kind: input, shape index: {}]
  %s3 = inlined_call_operand.vmem [shape: f32[128,128], index: 3, kind: input, shape index: {}]
  %s4 = inlined_call_operand.vmem [shape: f32[1,128], index: 4, kind: input, shape index: {}]
  %s5 = inlined_call_operand.vmem [shape: f32[8,4], index: 5, kind: output, shape index: {}]
  %s6 = sld [smem:[#allocation0]]
  $region34: #{policy_forward.1} parent=0
    _
  %s8 = ssub.s32 1, %s6
  %s9 = scalar_select 0, %s8, %s6
  $region1: #{policy_forward.1} parent=0
    #allocation2 [shape = 'u8[204800]{0}', space=vmem, size = 0x32000, scoped, tag = 'input window, operand 1, single buffered']
    #allocation3 [shape = 's32[1]{0}', space=sflag, size = 0x4, scoped, tag = 'scoped memory for policy_forward.1']
    %10 = vsyncpa [#allocation3], 0
    // Predicated region
    $region2: #{policy_forward.1} parent=1 // pred_check
      _
    $region3: #{policy_forward.1} parent=1 // pred_check_branch
      %12 = sbr.rel (0) target = $region5
    $region4: #{policy_forward.1} parent=1 // pred_region
      _
    $region5: #{policy_forward.1} parent=1 // pred_fallthru
      _
    // Predicated region
    $region6: #{policy_forward.1} parent=1 // pred_check
      _
    $region7: #{policy_forward.1} parent=1 // pred_check_branch
      %14 = sbr.rel (0) target = $region9
    $region8: #{policy_forward.1} parent=1 // pred_region
      %s16 = ssub.s32 6400, 6400
      %17 = vsyncadd [#allocation3], %s16
      %s18 = sshll.u32 [#allocation2], 4
      %s19 = int_to_ptr.vmem [resolvable:$true] %s18
      %24 = dma.hbm_to_vmem [thread:$0]  %s1, 6400, %s19, [#allocation3], 128, 128, 8
    $region9: #{policy_forward.1} parent=1 // pred_fallthru
      _
    // Predicated region
    $region10: #{policy_forward.1} parent=1 // pred_check
      _
    $region11: #{policy_forward.1} parent=1 // pred_check_branch
      %26 = sbr.rel (0) target = $region13
    $region12: #{policy_forward.1} parent=1 // pred_region
      _
    $region13: #{policy_forward.1} parent=1 // pred_fallthru
      _
    // Predicated region
    $region14: #{policy_forward.1} parent=1 // pred_check
      _
    $region15: #{policy_forward.1} parent=1 // pred_check_branch
      %28 = sbr.rel (0) target = $region17
    $region16: #{policy_forward.1} parent=1 // pred_region
      _
    $region17: #{policy_forward.1} parent=1 // pred_fallthru
      _
    // Predicated region
    $region18: #{policy_forward.1} parent=1 // pred_check
      _
    $region19: #{policy_forward.1} parent=1 // pred_check_branch
      %30 = sbr.rel (0) target = $region21
    $region20: #{policy_forward.1} parent=1 // pred_region
      _
    $region21: #{policy_forward.1} parent=1 // pred_fallthru
      _
    // Predicated region
    $region22: #{policy_forward.1} parent=1 // pred_check
      _
    $region23: #{policy_forward.1} parent=1 // pred_check_branch
      %32 = sbr.rel (0) target = $region25
    $region24: #{policy_forward.1} parent=1 // pred_region
      %33 = dma.done [#allocation3], 6400
    $region25: #{policy_forward.1} parent=1 // pred_fallthru
      _
    %v34 = vld [vmem:[%s0] sm:$0xff]
    %v35 = vld [vmem:[%s0 + $0x8] sm:$0xff]
    %v36 = vld [vmem:[%s0 + $0x10] sm:$0xff]
    %v37 = vld [vmem:[%s0 + $0x18] sm:$0xff]
    %v38 = vld [vmem:[#allocation2] sm:$0xff]
    %v39 = vld [vmem:[#allocation2 + $0x8] sm:$0xff]
    %v40 = vld [vmem:[#allocation2 + $0x10] sm:$0xff]
    %v41 = vld [vmem:[#allocation2 + $0x18] sm:$0xff]
    %v42 = vld [vmem:[#allocation2 + $0x20] sm:$0xff]
    %v43 = vld [vmem:[#allocation2 + $0x28] sm:$0xff]
    %v44 = vld [vmem:[#allocation2 + $0x30] sm:$0xff]
    %v45 = vld [vmem:[#allocation2 + $0x38] sm:$0xff]
    %v46 = vld [vmem:[#allocation2 + $0x40] sm:$0xff]
    %v47 = vld [vmem:[#allocation2 + $0x48] sm:$0xff]
    %v48 = vld [vmem:[#allocation2 + $0x50] sm:$0xff]
    %v49 = vld [vmem:[#allocation2 + $0x58] sm:$0xff]
    %v50 = vld [vmem:[#allocation2 + $0x60] sm:$0xff]
    %v51 = vld [vmem:[#allocation2 + $0x68] sm:$0xff]
    %v52 = vld [vmem:[#allocation2 + $0x70] sm:$0xff]
    %v53 = vld [vmem:[#allocation2 + $0x78] sm:$0xff]
    %v54 = vld [vmem:[#allocation2 + $0x80] sm:$0xff]
    %v55 = vld [vmem:[#allocation2 + $0x88] sm:$0xff]
    %v56 = vld [vmem:[#allocation2 + $0x90] sm:$0xff]
    %v57 = vld [vmem:[#allocation2 + $0x98] sm:$0xff]
    %v58 = vld [vmem:[#allocation2 + $0xa0] sm:$0xff]
    %v59 = vld [vmem:[#allocation2 + $0xa8] sm:$0xff]
    %v60 = vld [vmem:[#allocation2 + $0xb0] sm:$0xff]
    %v61 = vld [vmem:[#allocation2 + $0xb8] sm:$0xff]
    %v62 = vld [vmem:[#allocation2 + $0xc0] sm:$0xff]
    %v63 = vld [vmem:[#allocation2 + $0xc8] sm:$0xff]
    %v64 = vld [vmem:[#allocation2 + $0xd0] sm:$0xff]
    %v65 = vld [vmem:[#allocation2 + $0xd8] sm:$0xff]
    %v66 = vld [vmem:[#allocation2 + $0xe0] sm:$0xff]
    %v67 = vld [vmem:[#allocation2 + $0xe8] sm:$0xff]
    %v68 = vld [vmem:[#allocation2 + $0xf0] sm:$0xff]
    %v69 = vld [vmem:[#allocation2 + $0xf8] sm:$0xff]
    %v70 = vld [vmem:[#allocation2 + $0x100] sm:$0xff]
    %v71 = vld [vmem:[#allocation2 + $0x108] sm:$0xff]
    %v72 = vld [vmem:[#allocation2 + $0x110] sm:$0xff]
    %v73 = vld [vmem:[#allocation2 + $0x118] sm:$0xff]
    %v74 = vld [vmem:[#allocation2 + $0x120] sm:$0xff]
    %v75 = vld [vmem:[#allocation2 + $0x128] sm:$0xff]
    %v76 = vld [vmem:[#allocation2 + $0x130] sm:$0xff]
    %v77 = vld [vmem:[#allocation2 + $0x138] sm:$0xff]
    %v78 = vld [vmem:[#allocation2 + $0x140] sm:$0xff]
    %v79 = vld [vmem:[#allocation2 + $0x148] sm:$0xff]
    %v80 = vld [vmem:[#allocation2 + $0x150] sm:$0xff]
    %v81 = vld [vmem:[#allocation2 + $0x158] sm:$0xff]
    %v82 = vld [vmem:[#allocation2 + $0x160] sm:$0xff]
    %v83 = vld [vmem:[#allocation2 + $0x168] sm:$0xff]
    %v84 = vld [vmem:[#allocation2 + $0x170] sm:$0xff]
    %v85 = vld [vmem:[#allocation2 + $0x178] sm:$0xff]
    %v86 = vld [vmem:[#allocation2 + $0x180] sm:$0xff]
    %v87 = vld [vmem:[#allocation2 + $0x188] sm:$0xff]
    %v88 = vld [vmem:[%s2] sm:$0x1]
    %v90 = vlaneseq
    %v91 = vshrl.u32 %v90, 7
    %v92 = vsub.s32 0, %v91
    %v93 = vrot.slane %v88, %v92
    %vm95 = vcmask 130048
    %v97 = vsel %vm95, %v37, 0
    %99 = vmatprep.subr.mxu0 0.0
    %100 = vmatpush1.msra.mxu0 %v38
    %101 = vmatprep.subr.mxu0 0.0
    %102 = vmatpush1.msra.mxu0 %v39
    %103 = vmatprep.subr.mxu0 0.0
    %104 = vmatpush1.msra.mxu0 %v40
    %105 = vmatprep.subr.mxu0 0.0
    %106 = vmatpush1.msra.mxu0 %v41
    %107 = vmatprep.subr.mxu0 0.0
    %108 = vmatpush1.msra.mxu0 %v42
    %109 = vmatprep.subr.mxu0 0.0
    %110 = vmatpush1.msra.mxu0 %v43
    %111 = vmatprep.subr.mxu0 0.0
    %112 = vmatpush1.msra.mxu0 %v44
    %113 = vmatprep.subr.mxu0 0.0
    %114 = vmatpush1.msra.mxu0 %v45
    %115 = vmatprep.subr.mxu0 0.0
    %116 = vmatpush1.msra.mxu0 %v46
    %117 = vmatprep.subr.mxu0 0.0
    %118 = vmatpush1.msra.mxu0 %v47
    %119 = vmatprep.subr.mxu0 0.0
    %120 = vmatpush1.msra.mxu0 %v48
    %121 = vmatprep.subr.mxu0 0.0
    %122 = vmatpush1.msra.mxu0 %v49
    %123 = vmatprep.subr.mxu0 0.0
    %124 = vmatpush1.msra.mxu0 %v50
    %125 = vmatprep.subr.mxu0 0.0
    %126 = vmatpush1.msra.mxu0 %v51
    %127 = vmatprep.subr.mxu0 0.0
    %128 = vmatpush1.msra.mxu0 %v52
    %129 = vmatprep.subr.mxu0 0.0
    %130 = vmatpush1.msra.mxu0 %v53
    %131 = vmatprep.subr.mxu0 0.0
    %132 = vmatpush1.msra.mxu0 %v54
    %133 = vmatprep.subr.mxu0 0.0
    %134 = vmatpush1.msra.mxu0 %v55
    %135 = vmatprep.subr.mxu0 0.0
    %136 = vmatpush1.msra.mxu0 %v56
    %137 = vmatprep.subr.mxu0 0.0
    %138 = vmatpush1.msra.mxu0 %v57
    %139 = vmatprep.subr.mxu0 0.0
    %140 = vmatpush1.msra.mxu0 %v58
    %141 = vmatprep.subr.mxu0 0.0
    %142 = vmatpush1.msra.mxu0 %v59
    %143 = vmatprep.subr.mxu0 0.0
    %144 = vmatpush1.msra.mxu0 %v60
    %145 = vmatprep.subr.mxu0 0.0
    %146 = vmatpush1.msra.mxu0 %v61
    %147 = vmatprep.subr.mxu0 0.0
    %148 = vmatpush1.msra.mxu0 %v62
    %149 = vmatprep.subr.mxu0 0.0
    %150 = vmatpush1.msra.mxu0 %v63
    %151 = vmatprep.subr.mxu0 0.0
    %152 = vmatpush1.msra.mxu0 %v64
    %153 = vmatprep.subr.mxu0 0.0
    %154 = vmatpush1.msra.mxu0 %v65
    %155 = vmatprep.subr.mxu0 0.0
    %156 = vmatpush1.msra.mxu0 %v66
    %157 = vmatprep.subr.mxu0 0.0
    %158 = vmatpush1.msra.mxu0 %v67
    %159 = vmatprep.subr.mxu0 0.0
    %160 = vmatpush1.msra.mxu0 %v68
    %161 = vmatprep.subr.mxu0 0.0
    %162 = vmatpush1.msra.mxu0 %v69
    %163 = vmatprep.mubr.f32.mxu0 %v35
    %164 = vmatmul.mubr.f32.gmra.mrb[0].mxu0 %v34
    %v165 = vpop.f32.mrb[0].mxu0
    %v166 = vadd.f32 %v93, %v165
    %v167 = vpop.f32.mrb[0].mxu0
    %168 = vdwg.mxu0
    %169 = vmatprep.subr.mxu0 0.0
    %170 = vmatpush1.msra.mxu0 %v70
    %171 = vmatprep.subr.mxu0 0.0
    %172 = vmatpush1.msra.mxu0 %v71
    %173 = vmatprep.subr.mxu0 0.0
    %174 = vmatpush1.msra.mxu0 %v72
    %175 = vmatprep.subr.mxu0 0.0
    %176 = vmatpush1.msra.mxu0 %v73
    %177 = vmatprep.subr.mxu0 0.0
    %178 = vmatpush1.msra.mxu0 %v74
    %179 = vmatprep.subr.mxu0 0.0
    %180 = vmatpush1.msra.mxu0 %v75
    %181 = vmatprep.subr.mxu0 0.0
    %182 = vmatpush1.msra.mxu0 %v76
    %183 = vmatprep.subr.mxu0 0.0
    %184 = vmatpush1.msra.mxu0 %v77
    %185 = vmatprep.subr.mxu0 0.0
    %186 = vmatpush1.msra.mxu0 %v78
    %187 = vmatprep.subr.mxu0 0.0
    %188 = vmatpush1.msra.mxu0 %v79
    %189 = vmatprep.subr.mxu0 0.0
    %190 = vmatpush1.msra.mxu0 %v80
    %191 = vmatprep.subr.mxu0 0.0
    %192 = vmatpush1.msra.mxu0 %v81
    %193 = vmatprep.subr.mxu0 0.0
    %194 = vmatpush1.msra.mxu0 %v82
    %195 = vmatprep.subr.mxu0 0.0
    %196 = vmatpush1.msra.mxu0 %v83
    %197 = vmatprep.subr.mxu0 0.0
    %198 = vmatpush1.msra.mxu0 %v84
    %199 = vmatprep.subr.mxu0 0.0
    %200 = vmatpush1.msra.mxu0 %v85
    %201 = vmatprep.subr.mxu0 0.0
    %202 = vmatpush1.msra.mxu0 %v86
    %203 = vmatprep.subr.mxu0 0.0
    %204 = vmatpush1.msra.mxu0 %v87
    %205 = vmatprep.subr.mxu0 0.0
    %206 = vmatpush1.msra.mxu0 0.0
    %207 = vmatprep.subr.mxu0 0.0
    %208 = vmatpush1.msra.mxu0 0.0
    %209 = vmatprep.subr.mxu0 0.0
    %210 = vmatpush1.msra.mxu0 0.0
    %211 = vmatprep.subr.mxu0 0.0
    %212 = vmatpush1.msra.mxu0 0.0
    %213 = vmatprep.subr.mxu0 0.0
    %214 = vmatpush1.msra.mxu0 0.0
    %215 = vmatprep.subr.mxu0 0.0
    %216 = vmatpush1.msra.mxu0 0.0
    %217 = vmatprep.subr.mxu0 0.0
    %218 = vmatpush1.msra.mxu0 0.0
    %219 = vmatprep.subr.mxu0 0.0
    %220 = vmatpush1.msra.mxu0 0.0
    %221 = vmatprep.subr.mxu0 0.0
    %222 = vmatpush1.msra.mxu0 0.0
    %223 = vmatprep.subr.mxu0 0.0
    %224 = vmatpush1.msra.mxu0 0.0
    %225 = vmatprep.subr.mxu0 0.0
    %226 = vmatpush1.msra.mxu0 0.0
    %227 = vmatprep.subr.mxu0 0.0
    %228 = vmatpush1.msra.mxu0 0.0
    %229 = vmatprep.subr.mxu0 0.0
    %230 = vmatpush1.msra.mxu0 0.0
    %231 = vmatprep.subr.mxu0 0.0
    %232 = vmatpush1.msra.mxu0 0.0
    %233 = vmatprep.mubr.f32.mxu0 %v97
    %234 = vmatmul.mubr.f32.gmra.mrb[0].mxu0 %v36
    %v235 = vpop.f32.mrb[0].mxu0
    %v236 = vadd.f32 %v166, %v235
    %v237 = vpop.f32.mrb[0].mxu0
    %238 = vdwg.mxu0
    %v239 = vmax.f32 %v236, 0.0
    %v240 = vld [vmem:[%s3] sm:$0xff]
    %v241 = vld [vmem:[%s3 + $0x8] sm:$0xff]
    %v242 = vld [vmem:[%s3 + $0x10] sm:$0xff]
    %v243 = vld [vmem:[%s3 + $0x18] sm:$0xff]
    %v244 = vld [vmem:[%s3 + $0x20] sm:$0xff]
    %v245 = vld [vmem:[%s3 + $0x28] sm:$0xff]
    %v246 = vld [vmem:[%s3 + $0x30] sm:$0xff]
    %v247 = vld [vmem:[%s3 + $0x38] sm:$0xff]
    %v248 = vld [vmem:[%s3 + $0x40] sm:$0xff]
    %v249 = vld [vmem:[%s3 + $0x48] sm:$0xff]
    %v250 = vld [vmem:[%s3 + $0x50] sm:$0xff]
    %v251 = vld [vmem:[%s3 + $0x58] sm:$0xff]
    %v252 = vld [vmem:[%s3 + $0x60] sm:$0xff]
    %v253 = vld [vmem:[%s3 + $0x68] sm:$0xff]
    %v254 = vld [vmem:[%s3 + $0x70] sm:$0xff]
    %v255 = vld [vmem:[%s3 + $0x78] sm:$0xff]
    %v256 = vld [vmem:[%s4] sm:$0x1]
    %v258 = vlaneseq
    %v259 = vshrl.u32 %v258, 7
    %v260 = vsub.s32 0, %v259
    %v261 = vrot.slane %v256, %v260
    %263 = vmatprep.subr.mxu0 0.0
    %264 = vmatpush1.msra.mxu0 %v240
    %265 = vmatprep.subr.mxu0 0.0
    %266 = vmatpush1.msra.mxu0 %v241
    %267 = vmatprep.subr.mxu0 0.0
    %268 = vmatpush1.msra.mxu0 %v242
    %269 = vmatprep.subr.mxu0 0.0
    %270 = vmatpush1.msra.mxu0 %v243
    %271 = vmatprep.subr.mxu0 0.0
    %272 = vmatpush1.msra.mxu0 %v244
    %273 = vmatprep.subr.mxu0 0.0
    %274 = vmatpush1.msra.mxu0 %v245
    %275 = vmatprep.subr.mxu0 0.0
    %276 = vmatpush1.msra.mxu0 %v246
    %277 = vmatprep.subr.mxu0 0.0
    %278 = vmatpush1.msra.mxu0 %v247
    %279 = vmatprep.subr.mxu0 0.0
    %280 = vmatpush1.msra.mxu0 %v248
    %281 = vmatprep.subr.mxu0 0.0
    %282 = vmatpush1.msra.mxu0 %v249
    %283 = vmatprep.subr.mxu0 0.0
    %284 = vmatpush1.msra.mxu0 %v250
    %285 = vmatprep.subr.mxu0 0.0
    %286 = vmatpush1.msra.mxu0 %v251
    %287 = vmatprep.subr.mxu0 0.0
    %288 = vmatpush1.msra.mxu0 %v252
    %289 = vmatprep.subr.mxu0 0.0
    %290 = vmatpush1.msra.mxu0 %v253
    %291 = vmatprep.subr.mxu0 0.0
    %292 = vmatpush1.msra.mxu0 %v254
    %293 = vmatprep.subr.mxu0 0.0
    %294 = vmatpush1.msra.mxu0 %v255
    %295 = vmatprep.subr.mxu0 0.0
    %296 = vmatpush1.msra.mxu0 0.0
    %297 = vmatprep.subr.mxu0 0.0
    %298 = vmatpush1.msra.mxu0 0.0
    %299 = vmatprep.subr.mxu0 0.0
    %300 = vmatpush1.msra.mxu0 0.0
    %301 = vmatprep.subr.mxu0 0.0
    %302 = vmatpush1.msra.mxu0 0.0
    %303 = vmatprep.subr.mxu0 0.0
    %304 = vmatpush1.msra.mxu0 0.0
    %305 = vmatprep.subr.mxu0 0.0
    %306 = vmatpush1.msra.mxu0 0.0
    %307 = vmatprep.subr.mxu0 0.0
    %308 = vmatpush1.msra.mxu0 0.0
    %309 = vmatprep.subr.mxu0 0.0
    %310 = vmatpush1.msra.mxu0 0.0
    %311 = vmatprep.subr.mxu0 0.0
    %312 = vmatpush1.msra.mxu0 0.0
    %313 = vmatprep.subr.mxu0 0.0
    %314 = vmatpush1.msra.mxu0 0.0
    %315 = vmatprep.subr.mxu0 0.0
    %316 = vmatpush1.msra.mxu0 0.0
    %317 = vmatprep.subr.mxu0 0.0
    %318 = vmatpush1.msra.mxu0 0.0
    %319 = vmatprep.subr.mxu0 0.0
    %320 = vmatpush1.msra.mxu0 0.0
    %321 = vmatprep.subr.mxu0 0.0
    %322 = vmatpush1.msra.mxu0 0.0
    %323 = vmatprep.subr.mxu0 0.0
    %324 = vmatpush1.msra.mxu0 0.0
    %325 = vmatprep.subr.mxu0 0.0
    %326 = vmatpush1.msra.mxu0 0.0
    %327 = vmatprep.mubr.f32.mxu0 0.0
    %328 = vmatmul.mubr.f32.gmra.mrb[0].mxu0 %v239
    %v329 = vpop.f32.mrb[0].mxu0
    %v330 = vadd.f32 %v261, %v329
    %v331 = vpop.f32.mrb[0].mxu0
    %332 = vdwg.mxu0
    %v333 = vmax.f32 %v330, 0.0
    %vm334 = vcmask 31744
    %335 = vst.msk [vmem:[%s5] sm:$0xff] %vm334, %v333
    // Predicated region
    $region26: #{policy_forward.1} parent=1 // pred_check
      _
    $region27: #{policy_forward.1} parent=1 // pred_check_branch
      %337 = sbr.rel (0) target = $region29
    $region28: #{policy_forward.1} parent=1 // pred_region
      _
    $region29: #{policy_forward.1} parent=1 // pred_fallthru
      _
    // Predicated region
    $region30: #{policy_forward.1} parent=1 // pred_check
      _
    $region31: #{policy_forward.1} parent=1 // pred_check_branch
      %339 = sbr.rel (0) target = $region33
    $region32: #{policy_forward.1} parent=1 // pred_region
      _
    $region33: #{policy_forward.1} parent=1 // pred_fallthru
      _
    %340 = vsyncpa [#allocation3], 1

</llo_original>
